<compile_context>
chip_gen: v7x
topology: tpu7x:2x2x1
jax: 0.10.0
libtpu: 0.0.40
codegen_flags: <defaults>
</compile_context>

<pallas_src>
import jax
import jax.numpy as jnp
from jax.experimental import pallas as pl
from jax.experimental.pallas import tpu as pltpu


def _linear_add_relu_kernel(x1_ref, w_ref, b_ref, x2_ref, o_ref):
    # Everything is in SMEM; shapes are static and tiny, so fully unrolled
    # scalar arithmetic (a handful of sld/sadd/smul/sst, no vector path).
    B, OUT = o_ref.shape
    for i in range(B):
        xi = x1_ref[i, 0]                                   # scalar (IN == 1)
        for j in range(OUT):
            y = xi * w_ref[0, j] + b_ref[j] + x2_ref[i, j]  # linear + residual
            o_ref[i, j] = jnp.maximum(y, 0.0)               # relu


def model_forward(x1, w, b, x2):
    """x1: (B, 1) f32, w: (OUT, 1) f32, b: (OUT,) f32, x2: (B, OUT) f32."""
    B, IN = x1.shape
    OUT = w.shape[0]
    assert IN == 1, "scalar-path kernel is specialized for in_features == 1"

    # Metadata-only: with IN == 1, reshape(IN, OUT) is exactly w.T (no copy).
    w_row = w.reshape(IN, OUT)

    smem = pl.BlockSpec(memory_space=pltpu.MemorySpace.SMEM)
    # TODO(synk): if B ever grows, switch to a batched VMEM path with a
    # ("parallel",) grid over B and lane-dense (8k, 128m) output tiles.
    return pl.pallas_call(
        _linear_add_relu_kernel,
        out_shape=jax.ShapeDtypeStruct((B, OUT), jnp.float32),
        in_specs=[smem, smem, smem, smem],
        out_specs=smem,
    )(x1, w_row, b, x2)


if __name__ == "__main__":
    key = jax.random.PRNGKey(0)
    k_w, k_b = jax.random.split(key)

    IN, OUT, B = 1, 2, 1
    # Deterministic init mimicking nn.Linear: U(-1/sqrt(IN), 1/sqrt(IN))
    bound = 1.0 / (IN ** 0.5)
    w = jax.random.uniform(k_w, (OUT, IN), jnp.float32, -bound, bound)
    b = jax.random.uniform(k_b, (OUT,), jnp.float32, -bound, bound)

    # Module-level example inputs from the PyTorch script:
    x1 = jnp.ones((B, IN), dtype=jnp.float32)          # torch.ones((1, 1))
    x2 = jnp.full((B, OUT), 2.0, dtype=jnp.float32)    # torch.full((1, 2), 2)

    out = model_forward(x1, w, b, x2)
    out = jax.block_until_ready(out)

    # Reference check in plain JAX
    ref = jnp.maximum(x1 @ w.T + b + x2, 0.0)
    assert out.shape == (B, OUT)
    assert jnp.allclose(out, ref, atol=1e-6), (out, ref)
    print("KERNEL_OK")
</pallas_src>

<mosaic_0001>
module attributes {stable_mosaic.version = 11 : i64} {
  func.func @_linear_add_relu_kernel(%arg0: memref<1x1xf32, #tpu.memory_space<smem>>, %arg1: memref<1x2xf32, #tpu.memory_space<smem>>, %arg2: memref<2xf32, #tpu.memory_space<smem>>, %arg3: memref<1x2xf32, #tpu.memory_space<smem>>, %arg4: memref<1x2xf32, #tpu.memory_space<smem>>) attributes {dimension_semantics = [], scalar_prefetch = 0 : i64, scratch_operands = 0 : i64, tpu.core_type = #tpu.core_type<tc>} {
    %c0 = arith.constant 0 : index
    %c0_0 = arith.constant 0 : index
    %0 = memref.load %arg0[%c0, %c0_0] : memref<1x1xf32, #tpu.memory_space<smem>>
    %c0_1 = arith.constant 0 : index
    %c0_2 = arith.constant 0 : index
    %1 = memref.load %arg1[%c0_1, %c0_2] : memref<1x2xf32, #tpu.memory_space<smem>>
    %2 = arith.mulf %0, %1 : f32
    %c0_3 = arith.constant 0 : index
    %3 = memref.load %arg2[%c0_3] : memref<2xf32, #tpu.memory_space<smem>>
    %4 = arith.addf %2, %3 : f32
    %c0_4 = arith.constant 0 : index
    %c0_5 = arith.constant 0 : index
    %5 = memref.load %arg3[%c0_4, %c0_5] : memref<1x2xf32, #tpu.memory_space<smem>>
    %6 = arith.addf %4, %5 : f32
    %cst = arith.constant 0.000000e+00 : f32
    %7 = arith.maximumf %6, %cst : f32
    %c0_6 = arith.constant 0 : index
    %c0_7 = arith.constant 0 : index
    %8 = memref.load %arg4[%c0_6, %c0_7] : memref<1x2xf32, #tpu.memory_space<smem>>
    memref.store %7, %arg4[%c0_6, %c0_7] : memref<1x2xf32, #tpu.memory_space<smem>>
    %c0_8 = arith.constant 0 : index
    %c1 = arith.constant 1 : index
    %9 = memref.load %arg1[%c0_8, %c1] : memref<1x2xf32, #tpu.memory_space<smem>>
    %10 = arith.mulf %0, %9 : f32
    %c1_9 = arith.constant 1 : index
    %11 = memref.load %arg2[%c1_9] : memref<2xf32, #tpu.memory_space<smem>>
    %12 = arith.addf %10, %11 : f32
    %c0_10 = arith.constant 0 : index
    %c1_11 = arith.constant 1 : index
    %13 = memref.load %arg3[%c0_10, %c1_11] : memref<1x2xf32, #tpu.memory_space<smem>>
    %14 = arith.addf %12, %13 : f32
    %cst_12 = arith.constant 0.000000e+00 : f32
    %15 = arith.maximumf %14, %cst_12 : f32
    %c0_13 = arith.constant 0 : index
    %c1_14 = arith.constant 1 : index
    %16 = memref.load %arg4[%c0_13, %c1_14] : memref<1x2xf32, #tpu.memory_space<smem>>
    memref.store %15, %arg4[%c0_13, %c1_14] : memref<1x2xf32, #tpu.memory_space<smem>>
    return
  }
}

</mosaic_0001>

<llo_original>
// kernel: tpu_custom_call.1
$region0: #{tpu_custom_call.1}
  #allocation0 [shape = 'u32[]', space=smem, size = 0x4, offset = 0x4, fixed_abs, tag = 'smem constant byte address 0x4 - core index']
  #allocation1 [shape = 'u32[144,128]{1,0:T(1,128)}', space=vmem, size = 0x12000, scoped, tag = 'internal scratch']
  #allocation2 [shape = 'f32[1,1]{1,0:T(1,128)S(6)}', space=smem, size = 0x200, scoped, tag = 'scoped memory for tpu_custom_call.1']
  %s0 = inlined_call_operand.<no memory space> [shape: f32[1,1], index: 0, kind: input, shape index: {}]
  %s1 = inlined_call_operand.vmem [shape: f32[1,2], index: 1, kind: input, shape index: {}]
  %s2 = inlined_call_operand.vmem [shape: f32[2], index: 2, kind: input, shape index: {}]
  %s3 = inlined_call_operand.vmem [shape: f32[1,2], index: 3, kind: input, shape index: {}]
  %s4 = inlined_call_operand.hbm [shape: f32[1,2], index: 4, kind: output, shape index: {}]
  %s5 = sld [smem:[#allocation0]]
  $region38: #{tpu_custom_call.1} parent=0
    _
  %s7 = ssub.s32 1, %s5
  %s8 = scalar_select 0, %s7, %s5
  %9 = sst [smem:[#allocation2]] %s0
  $region1: #{tpu_custom_call.1} parent=0
    #allocation3 [shape = 'u8[512]{0}', space=smem, size = 0x200, scoped, tag = 'input window, operand 1, single buffered']
    #allocation4 [shape = 's32[1]{0}', space=sflag, size = 0x4, scoped, tag = 'scoped memory for tpu_custom_call.1']
    #allocation5 [shape = 's32[1]{0}', space=sflag, size = 0x4, scoped, tag = 'scoped memory for tpu_custom_call.1']
    #allocation6 [shape = 'u8[512]{0}', space=smem, size = 0x200, scoped, tag = 'input window, operand 2, single buffered']
    #allocation7 [shape = 's32[1]{0}', space=sflag, size = 0x4, scoped, tag = 'scoped memory for tpu_custom_call.1']
    #allocation8 [shape = 'u8[512]{0}', space=smem, size = 0x200, scoped, tag = 'input window, operand 3, single buffered']
    #allocation9 [shape = 'u8[512]{0}', space=smem, size = 0x200, scoped, tag = 'output window, operand 0, single buffered']
    %10 = vsyncpa [#allocation5], 0
    %11 = vsyncpa [#allocation7], 0
    %12 = vsyncpa [#allocation4], 0
    // Predicated region
    $region2: #{tpu_custom_call.1} parent=1 // pred_check
      _
    $region3: #{tpu_custom_call.1} parent=1 // pred_check_branch
      %14 = sbr.rel (0) target = $region5
    $region4: #{tpu_custom_call.1} parent=1 // pred_region
      _
    $region5: #{tpu_custom_call.1} parent=1 // pred_fallthru
      _
    // Predicated region
    $region6: #{tpu_custom_call.1} parent=1 // pred_check
      _
    $region7: #{tpu_custom_call.1} parent=1 // pred_check_branch
      %16 = sbr.rel (0) target = $region9
    $region8: #{tpu_custom_call.1} parent=1 // pred_region
      %s18 = ssub.s32 16, 16
      %19 = vsyncadd [#allocation5], %s18
      %s21 = sshll.u32 %s1, 4
      %s22 = int_to_ptr.vmem [resolvable:$true] %s21
      %24 = dma.vmem_to_smem %s22, 16, [#allocation3], [#allocation5]
    $region9: #{tpu_custom_call.1} parent=1 // pred_fallthru
      _
    // Predicated region
    $region10: #{tpu_custom_call.1} parent=1 // pred_check
      _
    $region11: #{tpu_custom_call.1} parent=1 // pred_check_branch
      %26 = sbr.rel (0) target = $region13
    $region12: #{tpu_custom_call.1} parent=1 // pred_region
      %s28 = ssub.s32 16, 16
      %29 = vsyncadd [#allocation7], %s28
      %s31 = sshll.u32 %s2, 4
      %s32 = int_to_ptr.vmem [resolvable:$true] %s31
      %34 = dma.vmem_to_smem %s32, 16, [#allocation6], [#allocation7]
    $region13: #{tpu_custom_call.1} parent=1 // pred_fallthru
      _
    // Predicated region
    $region14: #{tpu_custom_call.1} parent=1 // pred_check
      _
    $region15: #{tpu_custom_call.1} parent=1 // pred_check_branch
      %36 = sbr.rel (0) target = $region17
    $region16: #{tpu_custom_call.1} parent=1 // pred_region
      %s38 = ssub.s32 16, 16
      %39 = vsyncadd [#allocation7], %s38
      %s41 = sshll.u32 %s3, 4
      %s42 = int_to_ptr.vmem [resolvable:$true] %s41
      %44 = dma.vmem_to_smem %s42, 16, [#allocation8], [#allocation7]
    $region17: #{tpu_custom_call.1} parent=1 // pred_fallthru
      _
    // Predicated region
    $region18: #{tpu_custom_call.1} parent=1 // pred_check
      _
    $region19: #{tpu_custom_call.1} parent=1 // pred_check_branch
      %46 = sbr.rel (0) target = $region21
    $region20: #{tpu_custom_call.1} parent=1 // pred_region
      %47 = dma.done [#allocation5], 16
    $region21: #{tpu_custom_call.1} parent=1 // pred_fallthru
      _
    // Predicated region
    $region22: #{tpu_custom_call.1} parent=1 // pred_check
      _
    $region23: #{tpu_custom_call.1} parent=1 // pred_check_branch
      %49 = sbr.rel (0) target = $region25
    $region24: #{tpu_custom_call.1} parent=1 // pred_region
      %50 = dma.done [#allocation7], 16
    $region25: #{tpu_custom_call.1} parent=1 // pred_fallthru
      _
    // Predicated region
    $region26: #{tpu_custom_call.1} parent=1 // pred_check
      _
    $region27: #{tpu_custom_call.1} parent=1 // pred_check_branch
      %52 = sbr.rel (0) target = $region29
    $region28: #{tpu_custom_call.1} parent=1 // pred_region
      %53 = dma.done [#allocation7], 16
    $region29: #{tpu_custom_call.1} parent=1 // pred_fallthru
      _
    %54 = sfence
    %s55 = sld [smem:[#allocation2]]
    %s56 = sld [smem:[#allocation3]]
    %s57 = smul.f32 %s55, %s56
    %s58 = sld [smem:[#allocation6]]
    %s59 = sadd.f32 %s57, %s58
    %s60 = sld [smem:[#allocation8]]
    %s61 = sadd.f32 %s59, %s60
    %s62 = smax.f32 %s61, 0.0
    %s63 = scalar_lea.smem [#allocation9], 0
    %64 = sst [smem:[%s63]] %s62
    %s65 = sld [smem:[#allocation3 + $0x1]]
    %s66 = smul.f32 %s55, %s65
    %s67 = sld [smem:[#allocation6 + $0x1]]
    %s68 = sadd.f32 %s66, %s67
    %s69 = sld [smem:[#allocation8 + $0x1]]
    %s70 = sadd.f32 %s68, %s69
    %s71 = smax.f32 %s70, 0.0
    %s72 = scalar_lea.smem [#allocation9], 1
    %73 = sst [smem:[%s72]] %s71
    // Predicated region
    $region30: #{tpu_custom_call.1} parent=1 // pred_check
      _
    $region31: #{tpu_custom_call.1} parent=1 // pred_check_branch
      %75 = sbr.rel (0) target = $region33
    $region32: #{tpu_custom_call.1} parent=1 // pred_region
      %s77 = ssub.s32 16, 16
      %78 = vsyncadd [#allocation4], %s77
      %81 = dma.smem_to_hbm [#allocation9], 16, %s4, [#allocation4]
    $region33: #{tpu_custom_call.1} parent=1 // pred_fallthru
      _
    // Predicated region
    $region34: #{tpu_custom_call.1} parent=1 // pred_check
      _
    $region35: #{tpu_custom_call.1} parent=1 // pred_check_branch
      %83 = sbr.rel (0) target = $region37
    $region36: #{tpu_custom_call.1} parent=1 // pred_region
      %84 = dma.done [#allocation4], 16
    $region37: #{tpu_custom_call.1} parent=1 // pred_fallthru
      _
    %85 = sfence
    %86 = vsyncpa [#allocation4], 1
    %87 = vsyncpa [#allocation5], 1
    %88 = vsyncpa [#allocation7], 1

</llo_original>
